<compile_context>
chip_gen: v6e
topology: v6e:2x2x1
jax: 0.10.0
libtpu: 0.0.40
codegen_flags: <defaults>
</compile_context>

<pallas_src>
import functools

import jax
import jax.numpy as jnp
from jax.experimental import pallas as pl
from jax.experimental.pallas import tpu as pltpu


def _temporal_attention_kernel(*refs, heads, qkv_bias):
    if qkv_bias:
        (x_ref, wqkv_ref, bqkv_ref, wo_ref, bo_ref, mask_ref, o_ref) = refs
    else:
        (x_ref, wqkv_ref, wo_ref, bo_ref, mask_ref, o_ref) = refs

    x = x_ref[...]                          # (R, C), input dtype
    dt = x.dtype
    C = x.shape[-1]
    hd = C // heads

    # Fused qkv projection: one native-dtype MXU matmul, f32 accumulation.
    # (softmax scale is already folded into the q-columns of wqkv / bqkv).
    qkv = jnp.dot(x, wqkv_ref[...], preferred_element_type=jnp.float32)
    if qkv_bias:
        qkv = qkv + bqkv_ref[...]

    q = qkv[:, :C].astype(dt)
    k = qkv[:, C:2 * C].astype(dt)
    v = qkv[:, 2 * C:].astype(dt)

    bias = mask_ref[...]                    # (R, R) additive mask: 0 / -inf

    head_outs = []
    for h in range(heads):
        lo = h * hd
        qh = q[:, lo:lo + hd]
        kh = k[:, lo:lo + hd]
        vh = v[:, lo:lo + hd]
        # Scores over the row block; cross-window / future entries get -inf.
        s = jax.lax.dot_general(qh, kh, (((1,), (1,)), ((), ())),
                                preferred_element_type=jnp.float32)
        s = s + bias
        m = jnp.max(s, axis=-1, keepdims=True)
        p = jnp.exp(s - m)                                   # unnormalized, <= 1
        denom = jnp.sum(p, axis=-1, keepdims=True)           # (R, 1)
        oh = jnp.dot(p.astype(dt), vh, preferred_element_type=jnp.float32)
        # Normalize the (R, hd) output instead of the (R, R) probabilities.
        oh = oh * pl.reciprocal(denom, approx=True)
        head_outs.append(oh.astype(dt))

    attn_out = jnp.concatenate(head_outs, axis=-1)           # (R, C), heads packed

    # Output projection (+ bias); dropout is eval-mode identity.
    out = jnp.dot(attn_out, wo_ref[...],
                  preferred_element_type=jnp.float32) + bo_ref[...]
    o_ref[...] = out.astype(o_ref.dtype)


def _pick_block_rows(num_windows, window, target):
    """Largest whole-window row block that is a multiple of 8 and <= target."""
    best = None
    for d in range(1, num_windows + 1):
        if num_windows % d:
            continue
        rows = d * window
        if rows % 8 == 0 and rows <= target:
            best = rows
    if best is None:                        # fall back to a single block
        best = num_windows * window
    return best


def temporal_attention(x, wq, wk, wv, wo, bo, *, heads, window_size,
                       scale=None, bq=None, bk=None, bv=None,
                       block_rows_target=256):
    """Pallas TemporalAttention.forward; returns (out, None).

    Weights follow the "y = x @ w + b" convention (i.e. PyTorch weight.T):
      wq/wk/wv/wo: (C, C), bo: (C,), optional bq/bk/bv: (C,).
    """
    B_prev, T_prev, C = x.shape
    assert C % heads == 0, f"dim {C} should be divided by num_heads {heads}."
    head_dim = C // heads
    scale = float(scale) if scale is not None else head_dim ** (-0.5)
    W = int(window_size)
    assert W > 0, "window_size <= 0 path not implemented"
    N = B_prev * T_prev
    assert N % W == 0, "B*T must be divisible by window_size"

    dt = x.dtype
    x2 = x.reshape(N, C)                    # layout-preserving, no HBM copy
    num_windows = N // W
    R = _pick_block_rows(num_windows, W, block_rows_target)
    num_blocks = N // R

    # Block-diagonal (per-window) causal mask; identical for every row block
    # because R is a whole number of windows.  Additive f32 bias: 0 / -inf.
    idx = jnp.arange(R)
    same_window = (idx[:, None] // W) == (idx[None, :] // W)
    causal_ok = idx[None, :] <= idx[:, None]
    mask_bias = jnp.where(same_window & causal_ok, 0.0, -jnp.inf)
    mask_bias = mask_bias.astype(jnp.float32)

    # Fused qkv weight with the softmax scale folded into the q columns.
    wqkv = jnp.concatenate([wq * scale, wk, wv], axis=1).astype(dt)   # (C, 3C)
    wo_ = wo.astype(dt)
    bo_ = bo.reshape(1, C).astype(jnp.float32)

    qkv_bias = bq is not None
    if qkv_bias:
        bqkv = jnp.concatenate([bq * scale, bk, bv]).reshape(1, 3 * C)
        bqkv = bqkv.astype(jnp.float32)

    x_spec = pl.BlockSpec((R, C), lambda i: (i, 0))
    wqkv_spec = pl.BlockSpec((C, 3 * C), lambda i: (0, 0))    # resident in VMEM
    wo_spec = pl.BlockSpec((C, C), lambda i: (0, 0))
    bo_spec = pl.BlockSpec((1, C), lambda i: (0, 0))
    m_spec = pl.BlockSpec((R, R), lambda i: (0, 0))

    inputs = [x2, wqkv]
    in_specs = [x_spec, wqkv_spec]
    if qkv_bias:
        inputs.append(bqkv)
        in_specs.append(pl.BlockSpec((1, 3 * C), lambda i: (0, 0)))
    inputs += [wo_, bo_, mask_bias]
    in_specs += [wo_spec, bo_spec, m_spec]

    kernel = functools.partial(_temporal_attention_kernel,
                               heads=heads, qkv_bias=qkv_bias)

    out = pl.pallas_call(
        kernel,
        out_shape=jax.ShapeDtypeStruct((N, C), dt),
        grid_spec=pltpu.PrefetchScalarGridSpec(
            num_scalar_prefetch=0,
            grid=(num_blocks,),
            in_specs=in_specs,
            out_specs=pl.BlockSpec((R, C), lambda i: (i, 0)),
        ),
        compiler_params=pltpu.CompilerParams(
            dimension_semantics=("parallel",)),
    )(*inputs)

    return out.reshape(B_prev, T_prev, C), None


def _reference(x, wq, wk, wv, wo, bo, *, heads, window_size, scale=None,
               bq=None, bk=None, bv=None):
    """Pure-JAX reference mirroring the PyTorch forward (eval mode)."""
    B_prev, T_prev, C = x.shape
    head_dim = C // heads
    scale = scale if scale is not None else head_dim ** (-0.5)
    W = window_size
    xr = x.reshape(-1, W, C)
    B, T, _ = xr.shape

    def proj(t, w, b):
        y = t @ w
        return y if b is None else y + b

    def split_heads(t):
        return t.reshape(B, T, heads, head_dim).transpose(0, 2, 1, 3)

    q = split_heads(proj(xr, wq, bq))
    k = split_heads(proj(xr, wk, bk))
    v = split_heads(proj(xr, wv, bv))

    attn = jnp.einsum("bhte,bhse->bhts", q, k) * scale
    mask = jnp.tril(jnp.ones((W, W), dtype=bool))
    attn = jnp.where(mask[None, None], attn, -jnp.inf)
    attn = jax.nn.softmax(attn, axis=-1)
    out = jnp.einsum("bhts,bhsd->bhtd", attn, v)
    out = out.transpose(0, 2, 1, 3).reshape(B, T, C)
    out = out @ wo + bo
    return out.reshape(B_prev, T_prev, C)


if __name__ == "__main__":
    key = jax.random.PRNGKey(0)
    B, T, C = 2, 64, 32            # x: (batch, time, dim)
    heads, window = 2, 8           # heads=2 is the module default

    ks = jax.random.split(key, 9)
    x = jax.random.normal(ks[0], (B, T, C), dtype=jnp.float32)
    wq = jax.random.normal(ks[1], (C, C), dtype=jnp.float32) / jnp.sqrt(C)
    wk = jax.random.normal(ks[2], (C, C), dtype=jnp.float32) / jnp.sqrt(C)
    wv = jax.random.normal(ks[3], (C, C), dtype=jnp.float32) / jnp.sqrt(C)
    wo = jax.random.normal(ks[4], (C, C), dtype=jnp.float32) / jnp.sqrt(C)
    bo = 0.1 * jax.random.normal(ks[5], (C,), dtype=jnp.float32)

    # --- default module config: qkv_bias=False ---------------------------
    out, attn = temporal_attention(
        x, wq, wk, wv, wo, bo, heads=heads, window_size=window,
        block_rows_target=64)      # -> 2 row blocks, exercises the tiled grid
    out = jax.block_until_ready(out)

    ref = _reference(x, wq, wk, wv, wo, bo, heads=heads, window_size=window)
    assert out.shape == (B, T, C)
    assert attn is None
    # slightly loose tolerance: approx EUP reciprocal in the softmax denominator
    assert jnp.allclose(out, ref, atol=5e-3, rtol=5e-3), \
        float(jnp.max(jnp.abs(out - ref)))

    # --- qkv_bias=True path ----------------------------------------------
    bq = 0.1 * jax.random.normal(ks[6], (C,), dtype=jnp.float32)
    bk = 0.1 * jax.random.normal(ks[7], (C,), dtype=jnp.float32)
    bv = 0.1 * jax.random.normal(ks[8], (C,), dtype=jnp.float32)
    out_b, _ = temporal_attention(
        x, wq, wk, wv, wo, bo, heads=heads, window_size=window,
        bq=bq, bk=bk, bv=bv, block_rows_target=64)
    out_b = jax.block_until_ready(out_b)
    ref_b = _reference(x, wq, wk, wv, wo, bo, heads=heads, window_size=window,
                       bq=bq, bk=bk, bv=bv)
    assert jnp.allclose(out_b, ref_b, atol=5e-3, rtol=5e-3), \
        float(jnp.max(jnp.abs(out_b - ref_b)))

    print("KERNEL_OK")
</pallas_src>

<mosaic_0001>
module attributes {stable_mosaic.version = 11 : i64} {
  func.func @_temporal_attention_kernel(%arg0: i32, %arg1: memref<64x32xf32, #tpu.memory_space<vmem>>, %arg2: memref<32x96xf32, #tpu.memory_space<vmem>>, %arg3: memref<32x32xf32, #tpu.memory_space<vmem>>, %arg4: memref<1x32xf32, #tpu.memory_space<vmem>>, %arg5: memref<64x64xf32, #tpu.memory_space<vmem>>, %arg6: memref<64x32xf32, #tpu.memory_space<vmem>>) attributes {dimension_semantics = [#tpu.dimension_semantics<parallel>], iteration_bounds = array<i64: 2>, scalar_prefetch = 0 : i64, scratch_operands = 0 : i64, tpu.core_type = #tpu.core_type<tc>, window_params = [{transform_indices = @transform_0, window_bounds = array<i64: 64, 32>}, {pipeline_mode = #tpu.pipeline_mode<synchronous>, transform_indices = @transform_1, window_bounds = array<i64: 32, 96>}, {pipeline_mode = #tpu.pipeline_mode<synchronous>, transform_indices = @transform_2, window_bounds = array<i64: 32, 32>}, {pipeline_mode = #tpu.pipeline_mode<synchronous>, transform_indices = @transform_3, window_bounds = array<i64: 1, 32>}, {pipeline_mode = #tpu.pipeline_mode<synchronous>, transform_indices = @transform_4, window_bounds = array<i64: 64, 64>}, {transform_indices = @transform_5, window_bounds = array<i64: 64, 32>}]} {
    %c0 = arith.constant 0 : index
    %c0_0 = arith.constant 0 : index
    %0 = vector.load %arg1[%c0, %c0_0] : memref<64x32xf32, #tpu.memory_space<vmem>>, vector<64x32xf32>
    %c0_1 = arith.constant 0 : index
    %c0_2 = arith.constant 0 : index
    %1 = vector.load %arg2[%c0_1, %c0_2] : memref<32x96xf32, #tpu.memory_space<vmem>>, vector<32x96xf32>
    %cst = arith.constant dense<0.000000e+00> : vector<64x96xf32>
    %2 = tpu.matmul %0, %1, %cst {dimension_numbers = #tpu.dot_dimension_numbers<[1], [0], [0], [1], [0, 0, 1, 1], [], []>} : vector<64x32xf32>, vector<32x96xf32>, vector<64x96xf32> -> vector<64x96xf32>
    %3 = vector.extract_strided_slice %2 {offsets = [0, 0], sizes = [64, 32], strides = [1, 1]} : vector<64x96xf32> to vector<64x32xf32>
    %4 = vector.extract_strided_slice %2 {offsets = [0, 32], sizes = [64, 32], strides = [1, 1]} : vector<64x96xf32> to vector<64x32xf32>
    %5 = vector.extract_strided_slice %2 {offsets = [0, 64], sizes = [64, 32], strides = [1, 1]} : vector<64x96xf32> to vector<64x32xf32>
    %c0_3 = arith.constant 0 : index
    %c0_4 = arith.constant 0 : index
    %6 = vector.load %arg5[%c0_3, %c0_4] : memref<64x64xf32, #tpu.memory_space<vmem>>, vector<64x64xf32>
    %7 = vector.extract_strided_slice %3 {offsets = [0, 0], sizes = [64, 16], strides = [1, 1]} : vector<64x32xf32> to vector<64x16xf32>
    %8 = vector.extract_strided_slice %4 {offsets = [0, 0], sizes = [64, 16], strides = [1, 1]} : vector<64x32xf32> to vector<64x16xf32>
    %9 = vector.extract_strided_slice %5 {offsets = [0, 0], sizes = [64, 16], strides = [1, 1]} : vector<64x32xf32> to vector<64x16xf32>
    %cst_5 = arith.constant dense<0.000000e+00> : vector<64x64xf32>
    %10 = tpu.matmul %7, %8, %cst_5 {dimension_numbers = #tpu.dot_dimension_numbers<[1], [1], [0], [0], [0, 0, 1, 0], [], []>} : vector<64x16xf32>, vector<64x16xf32>, vector<64x64xf32> -> vector<64x64xf32>
    %11 = arith.addf %10, %6 : vector<64x64xf32>
    %cst_6 = arith.constant dense<0xFF800000> : vector<64xf32>
    %12 = vector.multi_reduction <maximumf>, %11, %cst_6 [1] : vector<64x64xf32> to vector<64xf32>
    %13 = vector.shape_cast %12 : vector<64xf32> to vector<64x1xf32>
    %14 = vector.broadcast %13 : vector<64x1xf32> to vector<64x64xf32>
    %15 = arith.subf %11, %14 : vector<64x64xf32>
    %16 = math.exp %15 : vector<64x64xf32>
    %cst_7 = arith.constant dense<0.000000e+00> : vector<64xf32>
    %17 = vector.multi_reduction <add>, %16, %cst_7 [1] : vector<64x64xf32> to vector<64xf32>
    %18 = vector.shape_cast %17 : vector<64xf32> to vector<64x1xf32>
    %cst_8 = arith.constant dense<0.000000e+00> : vector<64x16xf32>
    %19 = tpu.matmul %16, %9, %cst_8 {dimension_numbers = #tpu.dot_dimension_numbers<[1], [0], [0], [1], [0, 0, 1, 1], [], []>} : vector<64x64xf32>, vector<64x16xf32>, vector<64x16xf32> -> vector<64x16xf32>
    %20 = tpu.reciprocal %18 {approx = true} : vector<64x1xf32> -> vector<64x1xf32>
    %21 = vector.broadcast %20 : vector<64x1xf32> to vector<64x16xf32>
    %22 = arith.mulf %19, %21 : vector<64x16xf32>
    %23 = vector.extract_strided_slice %3 {offsets = [0, 16], sizes = [64, 16], strides = [1, 1]} : vector<64x32xf32> to vector<64x16xf32>
    %24 = vector.extract_strided_slice %4 {offsets = [0, 16], sizes = [64, 16], strides = [1, 1]} : vector<64x32xf32> to vector<64x16xf32>
    %25 = vector.extract_strided_slice %5 {offsets = [0, 16], sizes = [64, 16], strides = [1, 1]} : vector<64x32xf32> to vector<64x16xf32>
    %cst_9 = arith.constant dense<0.000000e+00> : vector<64x64xf32>
    %26 = tpu.matmul %23, %24, %cst_9 {dimension_numbers = #tpu.dot_dimension_numbers<[1], [1], [0], [0], [0, 0, 1, 0], [], []>} : vector<64x16xf32>, vector<64x16xf32>, vector<64x64xf32> -> vector<64x64xf32>
    %27 = arith.addf %26, %6 : vector<64x64xf32>
    %cst_10 = arith.constant dense<0xFF800000> : vector<64xf32>
    %28 = vector.multi_reduction <maximumf>, %27, %cst_10 [1] : vector<64x64xf32> to vector<64xf32>
    %29 = vector.shape_cast %28 : vector<64xf32> to vector<64x1xf32>
    %30 = vector.broadcast %29 : vector<64x1xf32> to vector<64x64xf32>
    %31 = arith.subf %27, %30 : vector<64x64xf32>
    %32 = math.exp %31 : vector<64x64xf32>
    %cst_11 = arith.constant dense<0.000000e+00> : vector<64xf32>
    %33 = vector.multi_reduction <add>, %32, %cst_11 [1] : vector<64x64xf32> to vector<64xf32>
    %34 = vector.shape_cast %33 : vector<64xf32> to vector<64x1xf32>
    %cst_12 = arith.constant dense<0.000000e+00> : vector<64x16xf32>
    %35 = tpu.matmul %32, %25, %cst_12 {dimension_numbers = #tpu.dot_dimension_numbers<[1], [0], [0], [1], [0, 0, 1, 1], [], []>} : vector<64x64xf32>, vector<64x16xf32>, vector<64x16xf32> -> vector<64x16xf32>
    %36 = tpu.reciprocal %34 {approx = true} : vector<64x1xf32> -> vector<64x1xf32>
    %37 = vector.broadcast %36 : vector<64x1xf32> to vector<64x16xf32>
    %38 = arith.mulf %35, %37 : vector<64x16xf32>
    %39 = tpu.concatenate %22, %38 in 1 : vector<64x16xf32>, vector<64x16xf32> -> vector<64x32xf32>
    %c0_13 = arith.constant 0 : index
    %c0_14 = arith.constant 0 : index
    %40 = vector.load %arg3[%c0_13, %c0_14] : memref<32x32xf32, #tpu.memory_space<vmem>>, vector<32x32xf32>
    %cst_15 = arith.constant dense<0.000000e+00> : vector<64x32xf32>
    %41 = tpu.matmul %39, %40, %cst_15 {dimension_numbers = #tpu.dot_dimension_numbers<[1], [0], [0], [1], [0, 0, 1, 1], [], []>} : vector<64x32xf32>, vector<32x32xf32>, vector<64x32xf32> -> vector<64x32xf32>
    %c0_16 = arith.constant 0 : index
    %c0_17 = arith.constant 0 : index
    %42 = vector.load %arg4[%c0_16, %c0_17] : memref<1x32xf32, #tpu.memory_space<vmem>>, vector<1x32xf32>
    %43 = vector.broadcast %42 : vector<1x32xf32> to vector<64x32xf32>
    %44 = arith.addf %41, %43 : vector<64x32xf32>
    %c0_18 = arith.constant 0 : index
    %c0_19 = arith.constant 0 : index
    %45 = vector.load %arg6[%c0_18, %c0_19] : memref<64x32xf32, #tpu.memory_space<vmem>>, vector<64x32xf32>
    tpu.vector_store %arg6[%c0_18, %c0_19], %44 {strides = array<i32>} : memref<64x32xf32, #tpu.memory_space<vmem>>, vector<64x32xf32>,
    return
  }
  func.func @transform_0(%arg0: i32) -> (i32, i32) {
    %c0_i32 = arith.constant 0 : i32
    %c0_i32_0 = arith.constant 0 : i32
    return %arg0, %c0_i32 : i32, i32
  }
  func.func @transform_1(%arg0: i32) -> (i32, i32) {
    %c0_i32 = arith.constant 0 : i32
    %c0_i32_0 = arith.constant 0 : i32
    %c0_i32_1 = arith.constant 0 : i32
    return %c0_i32, %c0_i32_0 : i32, i32
  }
  func.func @transform_2(%arg0: i32) -> (i32, i32) {
    %c0_i32 = arith.constant 0 : i32
    %c0_i32_0 = arith.constant 0 : i32
    %c0_i32_1 = arith.constant 0 : i32
    return %c0_i32, %c0_i32_0 : i32, i32
  }
  func.func @transform_3(%arg0: i32) -> (i32, i32) {
    %c0_i32 = arith.constant 0 : i32
    %c0_i32_0 = arith.constant 0 : i32
    %c0_i32_1 = arith.constant 0 : i32
    return %c0_i32, %c0_i32_0 : i32, i32
  }
  func.func @transform_4(%arg0: i32) -> (i32, i32) {
    %c0_i32 = arith.constant 0 : i32
    %c0_i32_0 = arith.constant 0 : i32
    %c0_i32_1 = arith.constant 0 : i32
    return %c0_i32, %c0_i32_0 : i32, i32
  }
  func.func @transform_5(%arg0: i32) -> (i32, i32) {
    %c0_i32 = arith.constant 0 : i32
    %c0_i32_0 = arith.constant 0 : i32
    return %arg0, %c0_i32 : i32, i32
  }
}

</mosaic_0001>

<llo_original>
// kernel: tpu_custom_call.1
$region0: #{tpu_custom_call.1}
  #allocation0 [shape = 'u32[]', space=smem, size = 0x4, offset = 0x4, fixed_abs, tag = 'smem constant byte address 0x4 - core index']
  #allocation1 [shape = 'u32[144,128]{1,0:T(1,128)}', space=vmem, size = 0x12000, scoped, tag = 'internal scratch']
  %s0 = inlined_call_operand.vmem [shape: f32[128,32], index: 0, kind: input, shape index: {}]
  %s1 = inlined_call_operand.vmem [shape: f32[32,96], index: 1, kind: input, shape index: {}]
  %s2 = inlined_call_operand.vmem [shape: f32[32,32], index: 2, kind: input, shape index: {}]
  %s3 = inlined_call_operand.vmem [shape: f32[1,32], index: 3, kind: input, shape index: {}]
  %s4 = inlined_call_operand.vmem [shape: f32[64,64], index: 4, kind: input, shape index: {}]
  %s5 = inlined_call_operand.vmem [shape: f32[128,32], index: 5, kind: output, shape index: {}]
  %s6 = sld [smem:[#allocation0]]
  $region53: #{tpu_custom_call.1} parent=0
    _
  %s8 = ssub.s32 1, %s6
  %s9 = scalar_select 0, %s8, %s6
  loop: start=0, step=1, limit=4
  $region2: #{tpu_custom_call.1} parent=0 // loop_pre_header
    _
  $region3: #{tpu_custom_call.1} parent=0 // loop_header
    %s11 = sphi 0, %s15
    %p12 = scmp.ge.s32.totalorder %s11, 4
    %s21 = sphi 0, %s23
    %s24 = sphi 0, %s21
    %s25 = sphi 0, %s24
    %s41 = sphi 0, %s25
    %s45 = sphi 0, %s45
    %s47 = sphi 0, %s45
    %s48 = sphi 0, %s47
    %s62 = sphi 0, %s48
    %s66 = sphi 0, %s66
    %s68 = sphi 0, %s66
    %s69 = sphi 0, %s68
    %s83 = sphi 0, %s69
    %s87 = sphi 0, %s87
    %s89 = sphi 0, %s87
    %s90 = sphi 0, %s89
    %s104 = sphi 0, %s90
    %s108 = sphi 0, %s108
    %s110 = sphi 0, %s108
    %s111 = sphi 0, %s110
    %s125 = sphi 0, %s111
    %s131 = sphi 0, %s133
    %s134 = sphi 0, %s131
    %s135 = sphi 0, %s134
    %s151 = sphi 0, %s135
  $region4: #{tpu_custom_call.1} parent=0 // loop_header_branch
    %14 = sbr.rel (%p12) target = $region8
  $region5: #{tpu_custom_call.1} parent=0 // loop_body
    %s16 = ssub.s32 %s11, 1
    %s17 = ssub.s32 %s11, 2
    %s18 = sadd.s32 %s11, 1
    %s19 = ssub.s32 %s11, %s18
    %p20 = scmp.eq.s32.totalorder %s19, 0
    %s22 = sadd.s32 %s21, 1
    %s23 = scalar_select %p20, %s21, %s22
    %p26 = pneg %p20
    %p27 = scmp.eq.s32.totalorder %s11, 1
    %p28 = por %p26, %p27
    %p29 = scmp.ne.s32.totalorder %s21, %s24
    %p30 = scmp.eq.s32.totalorder %s11, 0
    %p31 = por %p29, %p30
    %p32 = scmp.ne.s32.totalorder %s21, %s24
    %p33 = scmp.eq.s32.totalorder %s16, 1
    %p34 = por %p32, %p33
    %p35 = scmp.ne.s32.totalorder %s24, %s25
    %p36 = scmp.eq.s32.totalorder %s16, 0
    %p37 = por %p35, %p36
    %p38 = scmp.ne.s32.totalorder %s24, %s25
    %p39 = scmp.eq.s32.totalorder %s17, 1
    %p40 = por %p38, %p39
    %p42 = scmp.ne.s32.totalorder %s25, %s41
    %p43 = scmp.eq.s32.totalorder %s17, 0
    %p44 = por %p42, %p43
    %s46 = sadd.s32 %s45, 1
    %p49 = scmp.eq.s32.totalorder %s11, 1
    %p50 = scmp.ne.s32.totalorder %s45, %s47
    %p51 = scmp.eq.s32.totalorder %s11, 0
    %p52 = por %p50, %p51
    %p53 = scmp.ne.s32.totalorder %s45, %s47
    %p54 = scmp.eq.s32.totalorder %s16, 1
    %p55 = por %p53, %p54
    %p56 = scmp.ne.s32.totalorder %s47, %s48
    %p57 = scmp.eq.s32.totalorder %s16, 0
    %p58 = por %p56, %p57
    %p59 = scmp.ne.s32.totalorder %s47, %s48
    %p60 = scmp.eq.s32.totalorder %s17, 1
    %p61 = por %p59, %p60
    %p63 = scmp.ne.s32.totalorder %s48, %s62
    %p64 = scmp.eq.s32.totalorder %s17, 0
    %p65 = por %p63, %p64
    %s67 = sadd.s32 %s66, 1
    %p70 = scmp.eq.s32.totalorder %s11, 1
    %p71 = scmp.ne.s32.totalorder %s66, %s68
    %p72 = scmp.eq.s32.totalorder %s11, 0
    %p73 = por %p71, %p72
    %p74 = scmp.ne.s32.totalorder %s66, %s68
    %p75 = scmp.eq.s32.totalorder %s16, 1
    %p76 = por %p74, %p75
    %p77 = scmp.ne.s32.totalorder %s68, %s69
    %p78 = scmp.eq.s32.totalorder %s16, 0
    %p79 = por %p77, %p78
    %p80 = scmp.ne.s32.totalorder %s68, %s69
    %p81 = scmp.eq.s32.totalorder %s17, 1
    %p82 = por %p80, %p81
    %p84 = scmp.ne.s32.totalorder %s69, %s83
    %p85 = scmp.eq.s32.totalorder %s17, 0
    %p86 = por %p84, %p85
    %s88 = sadd.s32 %s87, 1
    %p91 = scmp.eq.s32.totalorder %s11, 1
    %p92 = scmp.ne.s32.totalorder %s87, %s89
    %p93 = scmp.eq.s32.totalorder %s11, 0
    %p94 = por %p92, %p93
    %p95 = scmp.ne.s32.totalorder %s87, %s89
    %p96 = scmp.eq.s32.totalorder %s16, 1
    %p97 = por %p95, %p96
    %p98 = scmp.ne.s32.totalorder %s89, %s90
    %p99 = scmp.eq.s32.totalorder %s16, 0
    %p100 = por %p98, %p99
    %p101 = scmp.ne.s32.totalorder %s89, %s90
    %p102 = scmp.eq.s32.totalorder %s17, 1
    %p103 = por %p101, %p102
    %p105 = scmp.ne.s32.totalorder %s90, %s104
    %p106 = scmp.eq.s32.totalorder %s17, 0
    %p107 = por %p105, %p106
    %s109 = sadd.s32 %s108, 1
    %p112 = scmp.eq.s32.totalorder %s11, 1
    %p113 = scmp.ne.s32.totalorder %s108, %s110
    %p114 = scmp.eq.s32.totalorder %s11, 0
    %p115 = por %p113, %p114
    %p116 = scmp.ne.s32.totalorder %s108, %s110
    %p117 = scmp.eq.s32.totalorder %s16, 1
    %p118 = por %p116, %p117
    %p119 = scmp.ne.s32.totalorder %s110, %s111
    %p120 = scmp.eq.s32.totalorder %s16, 0
    %p121 = por %p119, %p120
    %p122 = scmp.ne.s32.totalorder %s110, %s111
    %p123 = scmp.eq.s32.totalorder %s17, 1
    %p124 = por %p122, %p123
    %p126 = scmp.ne.s32.totalorder %s111, %s125
    %p127 = scmp.eq.s32.totalorder %s17, 0
    %p128 = por %p126, %p127
    %s129 = ssub.s32 %s11, %s18
    %p130 = scmp.eq.s32.totalorder %s129, 0
    %s132 = sadd.s32 %s131, 1
    %s133 = scalar_select %p130, %s131, %s132
    %p136 = pneg %p130
    %p137 = scmp.eq.s32.totalorder %s11, 1
    %p138 = por %p136, %p137
    %p139 = scmp.ne.s32.totalorder %s131, %s134
    %p140 = scmp.eq.s32.totalorder %s11, 0
    %p141 = por %p139, %p140
    %p142 = scmp.ne.s32.totalorder %s131, %s134
    %p143 = scmp.eq.s32.totalorder %s16, 1
    %p144 = por %p142, %p143
    %p145 = scmp.ne.s32.totalorder %s134, %s135
    %p146 = scmp.eq.s32.totalorder %s16, 0
    %p147 = por %p145, %p146
    %p148 = scmp.ne.s32.totalorder %s134, %s135
    %p149 = scmp.eq.s32.totalorder %s17, 1
    %p150 = por %p148, %p149
    %p152 = scmp.ne.s32.totalorder %s135, %s151
    %p153 = scmp.eq.s32.totalorder %s17, 0
    %p154 = por %p152, %p153
    %p155 = scmp.le.s32.totalorder 1, %s11
    %p156 = scmp.lt.s32.totalorder %s11, 3
    %p157 = pnand %p155, %p156
    %p158 = pneg %p157
    // Predicated region
    $region9: #{tpu_custom_call.1} parent=5 // pred_check
      _
    $region10: #{tpu_custom_call.1} parent=5 // pred_check_branch
      %160 = sbr.rel (%p157) target = $region12
    $region11: #{tpu_custom_call.1} parent=5 // pred_region
      %s161 = ssub.s32 %s11, 1
      // Predicated region
      $region13: #{tpu_custom_call.1} parent=11 // pred_check
        %p162 = pneg %p58
      $region14: #{tpu_custom_call.1} parent=11 // pred_check_branch
        %164 = sbr.rel (%p162) target = $region16
      $region15: #{tpu_custom_call.1} parent=11 // pred_region
        _
      $region16: #{tpu_custom_call.1} parent=11 // pred_fallthru
        _
      // Predicated region
      $region17: #{tpu_custom_call.1} parent=11 // pred_check
        %p165 = pneg %p79
      $region18: #{tpu_custom_call.1} parent=11 // pred_check_branch
        %167 = sbr.rel (%p165) target = $region20
      $region19: #{tpu_custom_call.1} parent=11 // pred_region
        _
      $region20: #{tpu_custom_call.1} parent=11 // pred_fallthru
        _
      // Predicated region
      $region21: #{tpu_custom_call.1} parent=11 // pred_check
        %p168 = pneg %p100
      $region22: #{tpu_custom_call.1} parent=11 // pred_check_branch
        %170 = sbr.rel (%p168) target = $region24
      $region23: #{tpu_custom_call.1} parent=11 // pred_region
        _
      $region24: #{tpu_custom_call.1} parent=11 // pred_fallthru
        _
      // Predicated region
      $region25: #{tpu_custom_call.1} parent=11 // pred_check
        %p171 = pneg %p121
      $region26: #{tpu_custom_call.1} parent=11 // pred_check_branch
        %173 = sbr.rel (%p171) target = $region28
      $region27: #{tpu_custom_call.1} parent=11 // pred_region
        _
      $region28: #{tpu_custom_call.1} parent=11 // pred_fallthru
        _
    $region12: #{tpu_custom_call.1} parent=5 // pred_fallthru
      _
    %p174 = scmp.lt.s32.totalorder %s11, 2
    // Predicated region
    $region29: #{tpu_custom_call.1} parent=5 // pred_check
      %p175 = pneg %p174
    $region30: #{tpu_custom_call.1} parent=5 // pred_check_branch
      %177 = sbr.rel (%p175) target = $region32
    $region31: #{tpu_custom_call.1} parent=5 // pred_region
      // Predicated region
      $region33: #{tpu_custom_call.1} parent=31 // pred_check
        %p178 = pneg %p31
      $region34: #{tpu_custom_call.1} parent=31 // pred_check_branch
        %180 = sbr.rel (%p178) target = $region36
      $region35: #{tpu_custom_call.1} parent=31 // pred_region
        %s181 = smul.u32 8, %s11
        %p182 = scmp.lt.s32.totalorder %s181, 15
        %s183 = scalar_select %p182, %s181, 15
        %s184 = smul.addr %s183, 8
        %s185 = scalar_lea.vmem %s0, %s184
        %s186 = smul.u32 8, %s11
      $region36: #{tpu_custom_call.1} parent=31 // pred_fallthru
        _
    $region32: #{tpu_custom_call.1} parent=5 // pred_fallthru
      _
    %p187 = scmp.le.s32.totalorder 1, %s11
    %p188 = scmp.lt.s32.totalorder %s11, 3
    %p189 = pnand %p187, %p188
    %p190 = pneg %p189
    // Predicated region
    $region37: #{tpu_custom_call.1} parent=5 // pred_check
      _
    $region38: #{tpu_custom_call.1} parent=5 // pred_check_branch
      %192 = sbr.rel (%p189) target = $region40
    $region39: #{tpu_custom_call.1} parent=5 // pred_region
      %s193 = ssub.s32 %s11, 1
      %s194 = smul.u32 8, %s16
      %p195 = scmp.lt.s32.totalorder %s194, 15
      %s196 = scalar_select %p195, %s194, 15
      %s197 = smul.addr %s196, 8
      %s198 = scalar_lea.vmem %s0, %s197
      %p199 = pneg %p37
      %p200 = pneg %p34
      %p201 = pneg %p58
      %p202 = pneg %p55
      %p203 = pneg %p79
      %p204 = pneg %p76
      %p205 = pneg %p100
      %p206 = pneg %p97
      %p207 = pneg %p121
      %p208 = pneg %p118
      %p209 = pneg %p147
      %p210 = pneg %p144
      %s211 = smul.u32 8, %s16
      %p212 = scmp.lt.s32.totalorder %s211, 15
      %s213 = scalar_select %p212, %s211, 15
      %s214 = smul.addr %s213, 8
      %s215 = scalar_lea.vmem %s5, %s214
      %s216 = smul.u32 8, %s16
      %p217 = scmp.lt.s32.totalorder %s216, 15
      %s218 = scalar_select %p217, %s216, 15
      %s219 = smul.addr %s218, 8
      %s220 = scalar_lea.vmem %s0, %s219
      %s221 = smul.u32 8, %s16
      %s222 = smul.u32 8, %s16
      %p223 = scmp.lt.s32.totalorder %s222, 15
      %s224 = scalar_select %p223, %s222, 15
      %s225 = smul.addr %s224, 8
      %s226 = scalar_lea.vmem %s5, %s225
      %s227 = smul.u32 8, %s16
      %v228 = vld [vmem:[%s220] sm:$0xff]
      %v229 = vld [vmem:[%s220 + $0x8] sm:$0xff]
      %v230 = vld [vmem:[%s220 + $0x10] sm:$0xff]
      %v231 = vld [vmem:[%s220 + $0x18] sm:$0xff]
      %v232 = vld [vmem:[%s220 + $0x20] sm:$0xff]
      %v233 = vld [vmem:[%s220 + $0x28] sm:$0xff]
      %v234 = vld [vmem:[%s220 + $0x30] sm:$0xff]
      %v235 = vld [vmem:[%s220 + $0x38] sm:$0xff]
      %v236 = vld [vmem:[%s1] sm:$0xff]
      %v237 = vld [vmem:[%s1 + $0x8] sm:$0xff]
      %v238 = vld [vmem:[%s1 + $0x10] sm:$0xff]
      %v239 = vld [vmem:[%s1 + $0x18] sm:$0xff]
      %vm240 = vcmask 261120
      %v242 = vsel %vm240, %v228, 0
      %v245 = vsel %vm240, %v229, 0
      %v248 = vsel %vm240, %v230, 0
      %v251 = vsel %vm240, %v231, 0
      %v254 = vsel %vm240, %v232, 0
      %v257 = vsel %vm240, %v233, 0
      %v260 = vsel %vm240, %v234, 0
      %v263 = vsel %vm240, %v235, 0
      %265 = vmatprep.subr.mxu0 0.0
      %266 = vmatpush1.msra.mxu0 0.0
      %267 = vmatprep.subr.mxu0 0.0
      %268 = vmatpush1.msra.mxu0 0.0
      %269 = vmatprep.subr.mxu0 0.0
      %270 = vmatpush1.msra.mxu0 0.0
      %271 = vmatprep.subr.mxu0 0.0
      %272 = vmatpush1.msra.mxu0 0.0
      %273 = vmatprep.subr.mxu0 0.0
      %274 = vmatpush1.msra.mxu0 0.0
      %275 = vmatprep.subr.mxu0 0.0
      %276 = vmatpush1.msra.mxu0 0.0
      %277 = vmatprep.subr.mxu0 0.0
      %278 = vmatpush1.msra.mxu0 0.0
      %279 = vmatprep.subr.mxu0 0.0
      %280 = vmatpush1.msra.mxu0 0.0
      %281 = vmatprep.subr.mxu0 0.0
      %282 = vmatpush1.msra.mxu0 0.0
      %283 = vmatprep.subr.mxu0 0.0
      %284 = vmatpush1.msra.mxu0 0.0
      %285 = vmatprep.subr.mxu0 0.0
      %286 = vmatpush1.msra.mxu0 0.0
      %287 = vmatprep.subr.mxu0 0.0
      %288 = vmatpush1.msra.mxu0 0.0
      %289 = vmatprep.subr.mxu0 0.0
      %290 = vmatpush1.msra.mxu0 %v239
      %291 = vmatprep.subr.mxu0 0.0
      %292 = vmatpush1.msra.mxu0 %v238
      %293 = vmatprep.subr.mxu0 0.0
      %294 = vmatpush1.msra.mxu0 %v237
      %295 = vmatprep.subr.mxu0 0.0
      %296 = vmatpush1.msra.mxu0 %v236
      %297 = vmatprep.subr.mxu0 0.0
      %298 = vmatpush2.msra.mxu0 0.0
      %299 = vmatprep.subr.mxu0 0.0
      %300 = vmatpush2.msra.mxu0 0.0
      %301 = vmatprep.subr.mxu0 0.0
      %302 = vmatpush2.msra.mxu0 0.0
      %303 = vmatprep.subr.mxu0 0.0
      %304 = vmatpush2.msra.mxu0 0.0
      %305 = vmatprep.subr.mxu0 0.0
      %306 = vmatpush2.msra.mxu0 0.0
      %307 = vmatprep.subr.mxu0 0.0
      %308 = vmatpush2.msra.mxu0 0.0
      %309 = vmatprep.subr.mxu0 0.0
      %310 = vmatpush2.msra.mxu0 0.0
      %311 = vmatprep.subr.mxu0 0.0
      %312 = vmatpush2.msra.mxu0 0.0
      %313 = vmatprep.subr.mxu0 0.0
      %314 = vmatpush2.msra.mxu0 0.0
      %315 = vmatprep.subr.mxu0 0.0
      %316 = vmatpush2.msra.mxu0 0.0
      %317 = vmatprep.subr.mxu0 0.0
      %318 = vmatpush2.msra.mxu0 0.0
      %319 = vmatprep.subr.mxu0 0.0
      %320 = vmatpush2.msra.mxu0 0.0
      %321 = vmatprep.subr.mxu0 0.0
      %322 = vmatpush2.msra.mxu0 0.0
      %323 = vmatprep.subr.mxu0 0.0
      %324 = vmatpush2.msra.mxu0 0.0
      %325 = vmatprep.subr.mxu0 0.0
      %326 = vmatpush2.msra.mxu0 0.0
      %327 = vmatprep.subr.mxu0 0.0
      %328 = vmatpush2.msra.mxu0 0.0
      %329 = vmatprep.mubr.f32.mxu0 0.0
      %330 = vmatmul.mubr.f32.gmra.mxu0 %v242
      %v331 = vpop.f32.mrf.mxu0
      %v332 = vadd.f32 0.0, %v331
      %v333 = vpop.f32.mrf.mxu0
      %334 = vmatprep.mubr.f32.mxu0 0.0
      %335 = vmatmul.mubr.f32.gmra.mxu0 %v245
      %v336 = vpop.f32.mrf.mxu0
      %v337 = vadd.f32 0.0, %v336
      %v338 = vpop.f32.mrf.mxu0
      %339 = vmatprep.mubr.f32.mxu0 0.0
      %340 = vmatmul.mubr.f32.gmra.mxu0 %v248
      %v341 = vpop.f32.mrf.mxu0
      %v342 = vadd.f32 0.0, %v341
      %v343 = vpop.f32.mrf.mxu0
      %344 = vmatprep.mubr.f32.mxu0 0.0
      %345 = vmatmul.mubr.f32.gmra.mxu0 %v251
      %v346 = vpop.f32.mrf.mxu0
      %v347 = vadd.f32 0.0, %v346
      %v348 = vpop.f32.mrf.mxu0
      %349 = vmatprep.mubr.f32.mxu0 0.0
      %350 = vmatmul.mubr.f32.gmra.mxu0 %v254
      %v351 = vpop.f32.mrf.mxu0
      %v352 = vadd.f32 0.0, %v351
      %v353 = vpop.f32.mrf.mxu0
      %354 = vmatprep.mubr.f32.mxu0 0.0
      %355 = vmatmul.mubr.f32.gmra.mxu0 %v257
      %v356 = vpop.f32.mrf.mxu0
      %v357 = vadd.f32 0.0, %v356
      %v358 = vpop.f32.mrf.mxu0
      %359 = vmatprep.mubr.f32.mxu0 0.0
      %360 = vmatmul.mubr.f32.gmra.mxu0 %v260
      %v361 = vpop.f32.mrf.mxu0
      %v362 = vadd.f32 0.0, %v361
      %v363 = vpop.f32.mrf.mxu0
      %364 = vmatprep.mubr.f32.mxu0 0.0
      %365 = vmatmul.mubr.f32.gmra.mxu0 %v263
      %v366 = vpop.f32.mrf.mxu0
      %v367 = vadd.f32 0.0, %v366
      %v368 = vpop.f32.mrf.mxu0
      %369 = vdwg.mxu0
      %v370 = vld [vmem:[%s4] sm:$0xff]
      %v371 = vld [vmem:[%s4 + $0x8] sm:$0xff]
      %v372 = vld [vmem:[%s4 + $0x10] sm:$0xff]
      %v373 = vld [vmem:[%s4 + $0x18] sm:$0xff]
      %v374 = vld [vmem:[%s4 + $0x20] sm:$0xff]
      %v375 = vld [vmem:[%s4 + $0x28] sm:$0xff]
      %v376 = vld [vmem:[%s4 + $0x30] sm:$0xff]
      %v377 = vld [vmem:[%s4 + $0x38] sm:$0xff]
      %386 = vrot.lane.b32.xlu0 %v332, 96
      %v387 = vpop.permute.xlu0 %386
      %388 = vrot.lane.b32.xlu0 %v337, 96
      %v389 = vpop.permute.xlu0 %388
      %390 = vrot.lane.b32.xlu0 %v342, 96
      %v391 = vpop.permute.xlu0 %390
      %392 = vrot.lane.b32.xlu0 %v347, 96
      %v393 = vpop.permute.xlu0 %392
      %394 = vrot.lane.b32.xlu0 %v352, 96
      %v395 = vpop.permute.xlu0 %394
      %396 = vrot.lane.b32.xlu0 %v357, 96
      %v397 = vpop.permute.xlu0 %396
      %398 = vrot.lane.b32.xlu0 %v362, 96
      %v399 = vpop.permute.xlu0 %398
      %400 = vrot.lane.b32.xlu0 %v367, 96
      %v401 = vpop.permute.xlu0 %400
      %vm402 = vcmask 130048
      %v403 = vsel %vm402, %v332, 0
      %v405 = vsel %vm402, %v337, 0
      %v407 = vsel %vm402, %v342, 0
      %v409 = vsel %vm402, %v347, 0
      %v411 = vsel %vm402, %v352, 0
      %v413 = vsel %vm402, %v357, 0
      %v415 = vsel %vm402, %v362, 0
      %v417 = vsel %vm402, %v367, 0
      %v419 = vsel %vm402, %v387, 0
      %v421 = vsel %vm402, %v389, 0
      %v423 = vsel %vm402, %v391, 0
      %v425 = vsel %vm402, %v393, 0
      %v427 = vsel %vm402, %v395, 0
      %v429 = vsel %vm402, %v397, 0
      %v431 = vsel %vm402, %v399, 0
      %v433 = vsel %vm402, %v401, 0
      %435 = vmatprep.subr.mxu0 0.0
      %436 = vmatpush1.xpose.msra.mxu0 0.0
      %437 = vmatprep.subr.mxu0 0.0
      %438 = vmatpush1.xpose.msra.mxu0 0.0
      %439 = vmatprep.subr.mxu0 0.0
      %440 = vmatpush1.xpose.msra.mxu0 0.0
      %441 = vmatprep.subr.mxu0 0.0
      %442 = vmatpush1.xpose.msra.mxu0 0.0
      %443 = vmatprep.subr.mxu0 0.0
      %444 = vmatpush1.xpose.msra.mxu0 0.0
      %445 = vmatprep.subr.mxu0 0.0
      %446 = vmatpush1.xpose.msra.mxu0 0.0
      %447 = vmatprep.subr.mxu0 0.0
      %448 = vmatpush1.xpose.msra.mxu0 0.0
      %449 = vmatprep.subr.mxu0 0.0
      %450 = vmatpush1.xpose.msra.mxu0 0.0
      %451 = vmatprep.subr.mxu0 0.0
      %452 = vmatpush1.xpose.msra.mxu0 %v433
      %453 = vmatprep.subr.mxu0 0.0
      %454 = vmatpush1.xpose.msra.mxu0 %v431
      %455 = vmatprep.subr.mxu0 0.0
      %456 = vmatpush1.xpose.msra.mxu0 %v429
      %457 = vmatprep.subr.mxu0 0.0
      %458 = vmatpush1.xpose.msra.mxu0 %v427
      %459 = vmatprep.subr.mxu0 0.0
      %460 = vmatpush1.xpose.msra.mxu0 %v425
      %461 = vmatprep.subr.mxu0 0.0
      %462 = vmatpush1.xpose.msra.mxu0 %v423
      %463 = vmatprep.subr.mxu0 0.0
      %464 = vmatpush1.xpose.msra.mxu0 %v421
      %465 = vmatprep.subr.mxu0 0.0
      %466 = vmatpush1.xpose.msra.mxu0 %v419
      %467 = vmatprep.subr.mxu0 0.0
      %468 = vmatpush2.xpose.msra.mxu0 0.0
      %469 = vmatprep.subr.mxu0 0.0
      %470 = vmatpush2.xpose.msra.mxu0 0.0
      %471 = vmatprep.subr.mxu0 0.0
      %472 = vmatpush2.xpose.msra.mxu0 0.0
      %473 = vmatprep.subr.mxu0 0.0
      %474 = vmatpush2.xpose.msra.mxu0 0.0
      %475 = vmatprep.subr.mxu0 0.0
      %476 = vmatpush2.xpose.msra.mxu0 0.0
      %477 = vmatprep.subr.mxu0 0.0
      %478 = vmatpush2.xpose.msra.mxu0 0.0
      %479 = vmatprep.subr.mxu0 0.0
      %480 = vmatpush2.xpose.msra.mxu0 0.0
      %481 = vmatprep.subr.mxu0 0.0
      %482 = vmatpush2.xpose.msra.mxu0 0.0
      %483 = vmatprep.subr.mxu0 0.0
      %484 = vmatpush2.xpose.msra.mxu0 0.0
      %485 = vmatprep.subr.mxu0 0.0
      %486 = vmatpush2.xpose.msra.mxu0 0.0
      %487 = vmatprep.subr.mxu0 0.0
      %488 = vmatpush2.xpose.msra.mxu0 0.0
      %489 = vmatprep.subr.mxu0 0.0
      %490 = vmatpush2.xpose.msra.mxu0 0.0
      %491 = vmatprep.subr.mxu0 0.0
      %492 = vmatpush2.xpose.msra.mxu0 0.0
      %493 = vmatprep.subr.mxu0 0.0
      %494 = vmatpush2.xpose.msra.mxu0 0.0
      %495 = vmatprep.subr.mxu0 0.0
      %496 = vmatpush2.xpose.msra.mxu0 0.0
      %497 = vmatprep.subr.mxu0 0.0
      %498 = vmatpush2.xpose.msra.mxu0 0.0
      %499 = vmatprep.mubr.f32.mxu0 0.0
      %500 = vmatmul.mubr.f32.gmra.mxu0 %v403
      %v501 = vpop.f32.mrf.mxu0
      %v502 = vadd.f32 %v370, %v501
      %v503 = vpop.f32.mrf.mxu0
      %504 = vmatprep.mubr.f32.mxu0 0.0
      %505 = vmatmul.mubr.f32.gmra.mxu0 %v405
      %v506 = vpop.f32.mrf.mxu0
      %v507 = vadd.f32 %v371, %v506
      %v508 = vpop.f32.mrf.mxu0
      %509 = vmatprep.mubr.f32.mxu0 0.0
      %510 = vmatmul.mubr.f32.gmra.mxu0 %v407
      %v511 = vpop.f32.mrf.mxu0
      %v512 = vadd.f32 %v372, %v511
      %v513 = vpop.f32.mrf.mxu0
      %514 = vmatprep.mubr.f32.mxu0 0.0
      %515 = vmatmul.mubr.f32.gmra.mxu0 %v409
      %v516 = vpop.f32.mrf.mxu0
      %v517 = vadd.f32 %v373, %v516
      %v518 = vpop.f32.mrf.mxu0
      %519 = vmatprep.mubr.f32.mxu0 0.0
      %520 = vmatmul.mubr.f32.gmra.mxu0 %v411
      %v521 = vpop.f32.mrf.mxu0
      %v522 = vadd.f32 %v374, %v521
      %v523 = vpop.f32.mrf.mxu0
      %524 = vmatprep.mubr.f32.mxu0 0.0
      %525 = vmatmul.mubr.f32.gmra.mxu0 %v413
      %v526 = vpop.f32.mrf.mxu0
      %v527 = vadd.f32 %v375, %v526
      %v528 = vpop.f32.mrf.mxu0
      %529 = vmatprep.mubr.f32.mxu0 0.0
      %530 = vmatmul.mubr.f32.gmra.mxu0 %v415
      %v531 = vpop.f32.mrf.mxu0
      %v532 = vadd.f32 %v376, %v531
      %v533 = vpop.f32.mrf.mxu0
      %534 = vmatprep.mubr.f32.mxu0 0.0
      %535 = vmatmul.mubr.f32.gmra.mxu0 %v417
      %v536 = vpop.f32.mrf.mxu0
      %v537 = vadd.f32 %v377, %v536
      %v538 = vpop.f32.mrf.mxu0
      %539 = vdwg.mxu0
      %vm540 = vcmask 523264
      %v541 = vsel %vm540, %v502, -inf
      %542 = vmax.xlane.f32.xlu0 %v541
      %v543 = vpop.xlane.xlu0 %542
      %v544 = vsel %vm540, %v507, -inf
      %545 = vmax.xlane.f32.xlu0 %v544
      %v546 = vpop.xlane.xlu0 %545
      %v547 = vsel %vm540, %v512, -inf
      %548 = vmax.xlane.f32.xlu0 %v547
      %v549 = vpop.xlane.xlu0 %548
      %v550 = vsel %vm540, %v517, -inf
      %551 = vmax.xlane.f32.xlu0 %v550
      %v552 = vpop.xlane.xlu0 %551
      %v553 = vsel %vm540, %v522, -inf
      %554 = vmax.xlane.f32.xlu0 %v553
      %v555 = vpop.xlane.xlu0 %554
      %v556 = vsel %vm540, %v527, -inf
      %557 = vmax.xlane.f32.xlu0 %v556
      %v558 = vpop.xlane.xlu0 %557
      %v559 = vsel %vm540, %v532, -inf
      %560 = vmax.xlane.f32.xlu0 %v559
      %v561 = vpop.xlane.xlu0 %560
      %v562 = vsel %vm540, %v537, -inf
      %563 = vmax.xlane.f32.xlu0 %v562
      %v564 = vpop.xlane.xlu0 %563
      %v565 = vsub.f32 %v502, %v543
      %v566 = vsub.f32 %v507, %v546
      %v567 = vsub.f32 %v512, %v549
      %v568 = vsub.f32 %v517, %v552
      %v569 = vsub.f32 %v522, %v555
      %v570 = vsub.f32 %v527, %v558
      %v571 = vsub.f32 %v532, %v561
      %v572 = vsub.f32 %v537, %v564
      %v573 = vmul.f32 %v565, 1.442695
      %v574 = vpow.pop %v573
      %v575 = vmul.f32 %v566, 1.442695
      %v576 = vpow.pop %v575
      %v577 = vmul.f32 %v567, 1.442695
      %v578 = vpow.pop %v577
      %v579 = vmul.f32 %v568, 1.442695
      %v580 = vpow.pop %v579
      %v581 = vmul.f32 %v569, 1.442695
      %v582 = vpow.pop %v581
      %v583 = vmul.f32 %v570, 1.442695
      %v584 = vpow.pop %v583
      %v585 = vmul.f32 %v571, 1.442695
      %v586 = vpow.pop %v585
      %v587 = vmul.f32 %v572, 1.442695
      %v588 = vpow.pop %v587
      %v589 = vsel %vm540, %v574, 0.0
      %590 = vadd.xlane.f32.xlu0 %v589
      %v591 = vpop.xlane.xlu0 %590
      %v592 = vsel %vm540, %v576, 0.0
      %593 = vadd.xlane.f32.xlu0 %v592
      %v594 = vpop.xlane.xlu0 %593
      %v595 = vsel %vm540, %v578, 0.0
      %596 = vadd.xlane.f32.xlu0 %v595
      %v597 = vpop.xlane.xlu0 %596
      %v598 = vsel %vm540, %v580, 0.0
      %599 = vadd.xlane.f32.xlu0 %v598
      %v600 = vpop.xlane.xlu0 %599
      %v601 = vsel %vm540, %v582, 0.0
      %602 = vadd.xlane.f32.xlu0 %v601
      %v603 = vpop.xlane.xlu0 %602
      %v604 = vsel %vm540, %v584, 0.0
      %605 = vadd.xlane.f32.xlu0 %v604
      %v606 = vpop.xlane.xlu0 %605
      %v607 = vsel %vm540, %v586, 0.0
      %608 = vadd.xlane.f32.xlu0 %v607
      %v609 = vpop.xlane.xlu0 %608
      %v610 = vsel %vm540, %v588, 0.0
      %611 = vadd.xlane.f32.xlu0 %v610
      %v612 = vpop.xlane.xlu0 %611
      %613 = vrot.lane.b32.xlu0 %v332, 64
      %v614 = vpop.permute.xlu0 %613
      %615 = vrot.lane.b32.xlu0 %v337, 64
      %v616 = vpop.permute.xlu0 %615
      %617 = vrot.lane.b32.xlu0 %v342, 64
      %v618 = vpop.permute.xlu0 %617
      %619 = vrot.lane.b32.xlu0 %v347, 64
      %v620 = vpop.permute.xlu0 %619
      %621 = vrot.lane.b32.xlu0 %v352, 64
      %v622 = vpop.permute.xlu0 %621
      %623 = vrot.lane.b32.xlu0 %v357, 64
      %v624 = vpop.permute.xlu0 %623
      %625 = vrot.lane.b32.xlu0 %v362, 64
      %v626 = vpop.permute.xlu0 %625
      %627 = vrot.lane.b32.xlu0 %v367, 64
      %v628 = vpop.permute.xlu0 %627
      %v638 = vsel %vm540, %v574, 0
      %v641 = vsel %vm540, %v576, 0
      %v644 = vsel %vm540, %v578, 0
      %v647 = vsel %vm540, %v580, 0
      %v650 = vsel %vm540, %v582, 0
      %v653 = vsel %vm540, %v584, 0
      %v656 = vsel %vm540, %v586, 0
      %v659 = vsel %vm540, %v588, 0
      %661 = vmatprep.subr.mxu0 0.0
      %662 = vmatpush1.msra.mxu0 0.0
      %663 = vmatprep.subr.mxu0 0.0
      %664 = vmatpush1.msra.mxu0 0.0
      %665 = vmatprep.subr.mxu0 0.0
      %666 = vmatpush1.msra.mxu0 0.0
      %667 = vmatprep.subr.mxu0 0.0
      %668 = vmatpush1.msra.mxu0 0.0
      %669 = vmatprep.subr.mxu0 0.0
      %670 = vmatpush1.msra.mxu0 0.0
      %671 = vmatprep.subr.mxu0 0.0
      %672 = vmatpush1.msra.mxu0 0.0
      %673 = vmatprep.subr.mxu0 0.0
      %674 = vmatpush1.msra.mxu0 0.0
      %675 = vmatprep.subr.mxu0 0.0
      %676 = vmatpush1.msra.mxu0 0.0
      %677 = vmatprep.subr.mxu0 0.0
      %678 = vmatpush1.msra.mxu0 %v628
      %679 = vmatprep.subr.mxu0 0.0
      %680 = vmatpush1.msra.mxu0 %v626
      %681 = vmatprep.subr.mxu0 0.0
      %682 = vmatpush1.msra.mxu0 %v624
      %683 = vmatprep.subr.mxu0 0.0
      %684 = vmatpush1.msra.mxu0 %v622
      %685 = vmatprep.subr.mxu0 0.0
      %686 = vmatpush1.msra.mxu0 %v620
      %687 = vmatprep.subr.mxu0 0.0
      %688 = vmatpush1.msra.mxu0 %v618
      %689 = vmatprep.subr.mxu0 0.0
      %690 = vmatpush1.msra.mxu0 %v616
      %691 = vmatprep.subr.mxu0 0.0
      %692 = vmatpush1.msra.mxu0 %v614
      %693 = vmatprep.subr.mxu0 0.0
      %694 = vmatpush2.msra.mxu0 0.0
      %695 = vmatprep.subr.mxu0 0.0
      %696 = vmatpush2.msra.mxu0 0.0
      %697 = vmatprep.subr.mxu0 0.0
      %698 = vmatpush2.msra.mxu0 0.0
      %699 = vmatprep.subr.mxu0 0.0
      %700 = vmatpush2.msra.mxu0 0.0
      %701 = vmatprep.subr.mxu0 0.0
      %702 = vmatpush2.msra.mxu0 0.0
      %703 = vmatprep.subr.mxu0 0.0
      %704 = vmatpush2.msra.mxu0 0.0
      %705 = vmatprep.subr.mxu0 0.0
      %706 = vmatpush2.msra.mxu0 0.0
      %707 = vmatprep.subr.mxu0 0.0
      %708 = vmatpush2.msra.mxu0 0.0
      %709 = vmatprep.subr.mxu0 0.0
      %710 = vmatpush2.msra.mxu0 0.0
      %711 = vmatprep.subr.mxu0 0.0
      %712 = vmatpush2.msra.mxu0 0.0
      %713 = vmatprep.subr.mxu0 0.0
      %714 = vmatpush2.msra.mxu0 0.0
      %715 = vmatprep.subr.mxu0 0.0
      %716 = vmatpush2.msra.mxu0 0.0
      %717 = vmatprep.subr.mxu0 0.0
      %718 = vmatpush2.msra.mxu0 0.0
      %719 = vmatprep.subr.mxu0 0.0
      %720 = vmatpush2.msra.mxu0 0.0
      %721 = vmatprep.subr.mxu0 0.0
      %722 = vmatpush2.msra.mxu0 0.0
      %723 = vmatprep.subr.mxu0 0.0
      %724 = vmatpush2.msra.mxu0 0.0
      %725 = vmatprep.mubr.f32.mxu0 0.0
      %726 = vmatmul.mubr.f32.gmra.mxu0 %v638
      %v727 = vpop.f32.mrf.mxu0
      %v728 = vadd.f32 0.0, %v727
      %v729 = vpop.f32.mrf.mxu0
      %730 = vmatprep.mubr.f32.mxu0 0.0
      %731 = vmatmul.mubr.f32.gmra.mxu0 %v641
      %v732 = vpop.f32.mrf.mxu0
      %v733 = vadd.f32 0.0, %v732
      %v734 = vpop.f32.mrf.mxu0
      %735 = vmatprep.mubr.f32.mxu0 0.0
      %736 = vmatmul.mubr.f32.gmra.mxu0 %v644
      %v737 = vpop.f32.mrf.mxu0
      %v738 = vadd.f32 0.0, %v737
      %v739 = vpop.f32.mrf.mxu0
      %740 = vmatprep.mubr.f32.mxu0 0.0
      %741 = vmatmul.mubr.f32.gmra.mxu0 %v647
      %v742 = vpop.f32.mrf.mxu0
      %v743 = vadd.f32 0.0, %v742
      %v744 = vpop.f32.mrf.mxu0
      %745 = vmatprep.mubr.f32.mxu0 0.0
      %746 = vmatmul.mubr.f32.gmra.mxu0 %v650
      %v747 = vpop.f32.mrf.mxu0
      %v748 = vadd.f32 0.0, %v747
      %v749 = vpop.f32.mrf.mxu0
      %750 = vmatprep.mubr.f32.mxu0 0.0
      %751 = vmatmul.mubr.f32.gmra.mxu0 %v653
      %v752 = vpop.f32.mrf.mxu0
      %v753 = vadd.f32 0.0, %v752
      %v754 = vpop.f32.mrf.mxu0
      %755 = vmatprep.mubr.f32.mxu0 0.0
      %756 = vmatmul.mubr.f32.gmra.mxu0 %v656
      %v757 = vpop.f32.mrf.mxu0
      %v758 = vadd.f32 0.0, %v757
      %v759 = vpop.f32.mrf.mxu0
      %760 = vmatprep.mubr.f32.mxu0 0.0
      %761 = vmatmul.mubr.f32.gmra.mxu0 %v659
      %v762 = vpop.f32.mrf.mxu0
      %v763 = vadd.f32 0.0, %v762
      %v764 = vpop.f32.mrf.mxu0
      %765 = vdwg.mxu0
      %v766 = vrcp.pop %v591
      %v767 = vrcp.pop %v594
      %v768 = vrcp.pop %v597
      %v769 = vrcp.pop %v600
      %v770 = vrcp.pop %v603
      %v771 = vrcp.pop %v606
      %v772 = vrcp.pop %v609
      %v773 = vrcp.pop %v612
      %v774 = vmul.f32 %v728, %v766
      %v775 = vmul.f32 %v733, %v767
      %v776 = vmul.f32 %v738, %v768
      %v777 = vmul.f32 %v743, %v769
      %v778 = vmul.f32 %v748, %v770
      %v779 = vmul.f32 %v753, %v771
      %v780 = vmul.f32 %v758, %v772
      %v781 = vmul.f32 %v763, %v773
      %782 = vrot.lane.b32.xlu0 %v332, 112
      %v783 = vpop.permute.xlu0 %782
      %784 = vrot.lane.b32.xlu0 %v337, 112
      %v785 = vpop.permute.xlu0 %784
      %786 = vrot.lane.b32.xlu0 %v342, 112
      %v787 = vpop.permute.xlu0 %786
      %788 = vrot.lane.b32.xlu0 %v347, 112
      %v789 = vpop.permute.xlu0 %788
      %790 = vrot.lane.b32.xlu0 %v352, 112
      %v791 = vpop.permute.xlu0 %790
      %792 = vrot.lane.b32.xlu0 %v357, 112
      %v793 = vpop.permute.xlu0 %792
      %794 = vrot.lane.b32.xlu0 %v362, 112
      %v795 = vpop.permute.xlu0 %794
      %796 = vrot.lane.b32.xlu0 %v367, 112
      %v797 = vpop.permute.xlu0 %796
      %798 = vrot.lane.b32.xlu0 %v332, 80
      %v799 = vpop.permute.xlu0 %798
      %800 = vrot.lane.b32.xlu0 %v337, 80
      %v801 = vpop.permute.xlu0 %800
      %802 = vrot.lane.b32.xlu0 %v342, 80
      %v803 = vpop.permute.xlu0 %802
      %804 = vrot.lane.b32.xlu0 %v347, 80
      %v805 = vpop.permute.xlu0 %804
      %806 = vrot.lane.b32.xlu0 %v352, 80
      %v807 = vpop.permute.xlu0 %806
      %808 = vrot.lane.b32.xlu0 %v357, 80
      %v809 = vpop.permute.xlu0 %808
      %810 = vrot.lane.b32.xlu0 %v362, 80
      %v811 = vpop.permute.xlu0 %810
      %812 = vrot.lane.b32.xlu0 %v367, 80
      %v813 = vpop.permute.xlu0 %812
      %v814 = vsel %vm402, %v783, 0
      %v816 = vsel %vm402, %v785, 0
      %v818 = vsel %vm402, %v787, 0
      %v820 = vsel %vm402, %v789, 0
      %v822 = vsel %vm402, %v791, 0
      %v824 = vsel %vm402, %v793, 0
      %v826 = vsel %vm402, %v795, 0
      %v828 = vsel %vm402, %v797, 0
      %v830 = vsel %vm402, %v799, 0
      %v832 = vsel %vm402, %v801, 0
      %v834 = vsel %vm402, %v803, 0
      %v836 = vsel %vm402, %v805, 0
      %v838 = vsel %vm402, %v807, 0
      %v840 = vsel %vm402, %v809, 0
      %v842 = vsel %vm402, %v811, 0
      %v844 = vsel %vm402, %v813, 0
      %846 = vmatprep.subr.mxu0 0.0
      %847 = vmatpush1.xpose.msra.mxu0 0.0
      %848 = vmatprep.subr.mxu0 0.0
      %849 = vmatpush1.xpose.msra.mxu0 0.0
      %850 = vmatprep.subr.mxu0 0.0
      %851 = vmatpush1.xpose.msra.mxu0 0.0
      %852 = vmatprep.subr.mxu0 0.0
      %853 = vmatpush1.xpose.msra.mxu0 0.0
      %854 = vmatprep.subr.mxu0 0.0
      %855 = vmatpush1.xpose.msra.mxu0 0.0
      %856 = vmatprep.subr.mxu0 0.0
      %857 = vmatpush1.xpose.msra.mxu0 0.0
      %858 = vmatprep.subr.mxu0 0.0
      %859 = vmatpush1.xpose.msra.mxu0 0.0
      %860 = vmatprep.subr.mxu0 0.0
      %861 = vmatpush1.xpose.msra.mxu0 0.0
      %862 = vmatprep.subr.mxu0 0.0
      %863 = vmatpush1.xpose.msra.mxu0 %v844
      %864 = vmatprep.subr.mxu0 0.0
      %865 = vmatpush1.xpose.msra.mxu0 %v842
      %866 = vmatprep.subr.mxu0 0.0
      %867 = vmatpush1.xpose.msra.mxu0 %v840
      %868 = vmatprep.subr.mxu0 0.0
      %869 = vmatpush1.xpose.msra.mxu0 %v838
      %870 = vmatprep.subr.mxu0 0.0
      %871 = vmatpush1.xpose.msra.mxu0 %v836
      %872 = vmatprep.subr.mxu0 0.0
      %873 = vmatpush1.xpose.msra.mxu0 %v834
      %874 = vmatprep.subr.mxu0 0.0
      %875 = vmatpush1.xpose.msra.mxu0 %v832
      %876 = vmatprep.subr.mxu0 0.0
      %877 = vmatpush1.xpose.msra.mxu0 %v830
      %878 = vmatprep.subr.mxu0 0.0
      %879 = vmatpush2.xpose.msra.mxu0 0.0
      %880 = vmatprep.subr.mxu0 0.0
      %881 = vmatpush2.xpose.msra.mxu0 0.0
      %882 = vmatprep.subr.mxu0 0.0
      %883 = vmatpush2.xpose.msra.mxu0 0.0
      %884 = vmatprep.subr.mxu0 0.0
      %885 = vmatpush2.xpose.msra.mxu0 0.0
      %886 = vmatprep.subr.mxu0 0.0
      %887 = vmatpush2.xpose.msra.mxu0 0.0
      %888 = vmatprep.subr.mxu0 0.0
      %889 = vmatpush2.xpose.msra.mxu0 0.0
      %890 = vmatprep.subr.mxu0 0.0
      %891 = vmatpush2.xpose.msra.mxu0 0.0
      %892 = vmatprep.subr.mxu0 0.0
      %893 = vmatpush2.xpose.msra.mxu0 0.0
      %894 = vmatprep.subr.mxu0 0.0
      %895 = vmatpush2.xpose.msra.mxu0 0.0
      %896 = vmatprep.subr.mxu0 0.0
      %897 = vmatpush2.xpose.msra.mxu0 0.0
      %898 = vmatprep.subr.mxu0 0.0
      %899 = vmatpush2.xpose.msra.mxu0 0.0
      %900 = vmatprep.subr.mxu0 0.0
      %901 = vmatpush2.xpose.msra.mxu0 0.0
      %902 = vmatprep.subr.mxu0 0.0
      %903 = vmatpush2.xpose.msra.mxu0 0.0
      %904 = vmatprep.subr.mxu0 0.0
      %905 = vmatpush2.xpose.msra.mxu0 0.0
      %906 = vmatprep.subr.mxu0 0.0
      %907 = vmatpush2.xpose.msra.mxu0 0.0
      %908 = vmatprep.subr.mxu0 0.0
      %909 = vmatpush2.xpose.msra.mxu0 0.0
      %910 = vmatprep.mubr.f32.mxu0 0.0
      %911 = vmatmul.mubr.f32.gmra.mxu0 %v814
      %v912 = vpop.f32.mrf.mxu0
      %v913 = vadd.f32 %v370, %v912
      %v914 = vpop.f32.mrf.mxu0
      %915 = vmatprep.mubr.f32.mxu0 0.0
      %916 = vmatmul.mubr.f32.gmra.mxu0 %v816
      %v917 = vpop.f32.mrf.mxu0
      %v918 = vadd.f32 %v371, %v917
      %v919 = vpop.f32.mrf.mxu0
      %920 = vmatprep.mubr.f32.mxu0 0.0
      %921 = vmatmul.mubr.f32.gmra.mxu0 %v818
      %v922 = vpop.f32.mrf.mxu0
      %v923 = vadd.f32 %v372, %v922
      %v924 = vpop.f32.mrf.mxu0
      %925 = vmatprep.mubr.f32.mxu0 0.0
      %926 = vmatmul.mubr.f32.gmra.mxu0 %v820
      %v927 = vpop.f32.mrf.mxu0
      %v928 = vadd.f32 %v373, %v927
      %v929 = vpop.f32.mrf.mxu0
      %930 = vmatprep.mubr.f32.mxu0 0.0
      %931 = vmatmul.mubr.f32.gmra.mxu0 %v822
      %v932 = vpop.f32.mrf.mxu0
      %v933 = vadd.f32 %v374, %v932
      %v934 = vpop.f32.mrf.mxu0
      %935 = vmatprep.mubr.f32.mxu0 0.0
      %936 = vmatmul.mubr.f32.gmra.mxu0 %v824
      %v937 = vpop.f32.mrf.mxu0
      %v938 = vadd.f32 %v375, %v937
      %v939 = vpop.f32.mrf.mxu0
      %940 = vmatprep.mubr.f32.mxu0 0.0
      %941 = vmatmul.mubr.f32.gmra.mxu0 %v826
      %v942 = vpop.f32.mrf.mxu0
      %v943 = vadd.f32 %v376, %v942
      %v944 = vpop.f32.mrf.mxu0
      %945 = vmatprep.mubr.f32.mxu0 0.0
      %946 = vmatmul.mubr.f32.gmra.mxu0 %v828
      %v947 = vpop.f32.mrf.mxu0
      %v948 = vadd.f32 %v377, %v947
      %v949 = vpop.f32.mrf.mxu0
      %950 = vdwg.mxu0
      %v951 = vsel %vm540, %v913, -inf
      %952 = vmax.xlane.f32.xlu0 %v951
      %v953 = vpop.xlane.xlu0 %952
      %v954 = vsel %vm540, %v918, -inf
      %955 = vmax.xlane.f32.xlu0 %v954
      %v956 = vpop.xlane.xlu0 %955
      %v957 = vsel %vm540, %v923, -inf
      %958 = vmax.xlane.f32.xlu0 %v957
      %v959 = vpop.xlane.xlu0 %958
      %v960 = vsel %vm540, %v928, -inf
      %961 = vmax.xlane.f32.xlu0 %v960
      %v962 = vpop.xlane.xlu0 %961
      %v963 = vsel %vm540, %v933, -inf
      %964 = vmax.xlane.f32.xlu0 %v963
      %v965 = vpop.xlane.xlu0 %964
      %v966 = vsel %vm540, %v938, -inf
      %967 = vmax.xlane.f32.xlu0 %v966
      %v968 = vpop.xlane.xlu0 %967
      %v969 = vsel %vm540, %v943, -inf
      %970 = vmax.xlane.f32.xlu0 %v969
      %v971 = vpop.xlane.xlu0 %970
      %v972 = vsel %vm540, %v948, -inf
      %973 = vmax.xlane.f32.xlu0 %v972
      %v974 = vpop.xlane.xlu0 %973
      %v975 = vsub.f32 %v913, %v953
      %v976 = vsub.f32 %v918, %v956
      %v977 = vsub.f32 %v923, %v959
      %v978 = vsub.f32 %v928, %v962
      %v979 = vsub.f32 %v933, %v965
      %v980 = vsub.f32 %v938, %v968
      %v981 = vsub.f32 %v943, %v971
      %v982 = vsub.f32 %v948, %v974
      %v983 = vmul.f32 %v975, 1.442695
      %v984 = vpow.pop %v983
      %v985 = vmul.f32 %v976, 1.442695
      %v986 = vpow.pop %v985
      %v987 = vmul.f32 %v977, 1.442695
      %v988 = vpow.pop %v987
      %v989 = vmul.f32 %v978, 1.442695
      %v990 = vpow.pop %v989
      %v991 = vmul.f32 %v979, 1.442695
      %v992 = vpow.pop %v991
      %v993 = vmul.f32 %v980, 1.442695
      %v994 = vpow.pop %v993
      %v995 = vmul.f32 %v981, 1.442695
      %v996 = vpow.pop %v995
      %v997 = vmul.f32 %v982, 1.442695
      %v998 = vpow.pop %v997
      %v999 = vsel %vm540, %v984, 0.0
      %1000 = vadd.xlane.f32.xlu0 %v999
      %v1001 = vpop.xlane.xlu0 %1000
      %v1002 = vsel %vm540, %v986, 0.0
      %1003 = vadd.xlane.f32.xlu0 %v1002
      %v1004 = vpop.xlane.xlu0 %1003
      %v1005 = vsel %vm540, %v988, 0.0
      %1006 = vadd.xlane.f32.xlu0 %v1005
      %v1007 = vpop.xlane.xlu0 %1006
      %v1008 = vsel %vm540, %v990, 0.0
      %1009 = vadd.xlane.f32.xlu0 %v1008
      %v1010 = vpop.xlane.xlu0 %1009
      %v1011 = vsel %vm540, %v992, 0.0
      %1012 = vadd.xlane.f32.xlu0 %v1011
      %v1013 = vpop.xlane.xlu0 %1012
      %v1014 = vsel %vm540, %v994, 0.0
      %1015 = vadd.xlane.f32.xlu0 %v1014
      %v1016 = vpop.xlane.xlu0 %1015
      %v1017 = vsel %vm540, %v996, 0.0
      %1018 = vadd.xlane.f32.xlu0 %v1017
      %v1019 = vpop.xlane.xlu0 %1018
      %v1020 = vsel %vm540, %v998, 0.0
      %1021 = vadd.xlane.f32.xlu0 %v1020
      %v1022 = vpop.xlane.xlu0 %1021
      %1023 = vrot.lane.b32.xlu0 %v332, 48
      %v1024 = vpop.permute.xlu0 %1023
      %1025 = vrot.lane.b32.xlu0 %v337, 48
      %v1026 = vpop.permute.xlu0 %1025
      %1027 = vrot.lane.b32.xlu0 %v342, 48
      %v1028 = vpop.permute.xlu0 %1027
      %1029 = vrot.lane.b32.xlu0 %v347, 48
      %v1030 = vpop.permute.xlu0 %1029
      %1031 = vrot.lane.b32.xlu0 %v352, 48
      %v1032 = vpop.permute.xlu0 %1031
      %1033 = vrot.lane.b32.xlu0 %v357, 48
      %v1034 = vpop.permute.xlu0 %1033
      %1035 = vrot.lane.b32.xlu0 %v362, 48
      %v1036 = vpop.permute.xlu0 %1035
      %1037 = vrot.lane.b32.xlu0 %v367, 48
      %v1038 = vpop.permute.xlu0 %1037
      %v1048 = vsel %vm540, %v984, 0
      %v1051 = vsel %vm540, %v986, 0
      %v1054 = vsel %vm540, %v988, 0
      %v1057 = vsel %vm540, %v990, 0
      %v1060 = vsel %vm540, %v992, 0
      %v1063 = vsel %vm540, %v994, 0
      %v1066 = vsel %vm540, %v996, 0
      %v1069 = vsel %vm540, %v998, 0
      %1071 = vmatprep.subr.mxu0 0.0
      %1072 = vmatpush1.msra.mxu0 0.0
      %1073 = vmatprep.subr.mxu0 0.0
      %1074 = vmatpush1.msra.mxu0 0.0
      %1075 = vmatprep.subr.mxu0 0.0
      %1076 = vmatpush1.msra.mxu0 0.0
      %1077 = vmatprep.subr.mxu0 0.0
      %1078 = vmatpush1.msra.mxu0 0.0
      %1079 = vmatprep.subr.mxu0 0.0
      %1080 = vmatpush1.msra.mxu0 0.0
      %1081 = vmatprep.subr.mxu0 0.0
      %1082 = vmatpush1.msra.mxu0 0.0
      %1083 = vmatprep.subr.mxu0 0.0
      %1084 = vmatpush1.msra.mxu0 0.0
      %1085 = vmatprep.subr.mxu0 0.0
      %1086 = vmatpush1.msra.mxu0 0.0
      %1087 = vmatprep.subr.mxu0 0.0
      %1088 = vmatpush1.msra.mxu0 %v1038
      %1089 = vmatprep.subr.mxu0 0.0
      %1090 = vmatpush1.msra.mxu0 %v1036
      %1091 = vmatprep.subr.mxu0 0.0
      %1092 = vmatpush1.msra.mxu0 %v1034
      %1093 = vmatprep.subr.mxu0 0.0
      %1094 = vmatpush1.msra.mxu0 %v1032
      %1095 = vmatprep.subr.mxu0 0.0
      %1096 = vmatpush1.msra.mxu0 %v1030
      %1097 = vmatprep.subr.mxu0 0.0
      %1098 = vmatpush1.msra.mxu0 %v1028
      %1099 = vmatprep.subr.mxu0 0.0
      %1100 = vmatpush1.msra.mxu0 %v1026
      %1101 = vmatprep.subr.mxu0 0.0
      %1102 = vmatpush1.msra.mxu0 %v1024
      %1103 = vmatprep.subr.mxu0 0.0
      %1104 = vmatpush2.msra.mxu0 0.0
      %1105 = vmatprep.subr.mxu0 0.0
      %1106 = vmatpush2.msra.mxu0 0.0
      %1107 = vmatprep.subr.mxu0 0.0
      %1108 = vmatpush2.msra.mxu0 0.0
      %1109 = vmatprep.subr.mxu0 0.0
      %1110 = vmatpush2.msra.mxu0 0.0
      %1111 = vmatprep.subr.mxu0 0.0
      %1112 = vmatpush2.msra.mxu0 0.0
      %1113 = vmatprep.subr.mxu0 0.0
      %1114 = vmatpush2.msra.mxu0 0.0
      %1115 = vmatprep.subr.mxu0 0.0
      %1116 = vmatpush2.msra.mxu0 0.0
      %1117 = vmatprep.subr.mxu0 0.0
      %1118 = vmatpush2.msra.mxu0 0.0
      %1119 = vmatprep.subr.mxu0 0.0
      %1120 = vmatpush2.msra.mxu0 0.0
      %1121 = vmatprep.subr.mxu0 0.0
      %1122 = vmatpush2.msra.mxu0 0.0
      %1123 = vmatprep.subr.mxu0 0.0
      %1124 = vmatpush2.msra.mxu0 0.0
      %1125 = vmatprep.subr.mxu0 0.0
      %1126 = vmatpush2.msra.mxu0 0.0
      %1127 = vmatprep.subr.mxu0 0.0
      %1128 = vmatpush2.msra.mxu0 0.0
      %1129 = vmatprep.subr.mxu0 0.0
      %1130 = vmatpush2.msra.mxu0 0.0
      %1131 = vmatprep.subr.mxu0 0.0
      %1132 = vmatpush2.msra.mxu0 0.0
      %1133 = vmatprep.subr.mxu0 0.0
      %1134 = vmatpush2.msra.mxu0 0.0
      %1135 = vmatprep.mubr.f32.mxu0 0.0
      %1136 = vmatmul.mubr.f32.gmra.mxu0 %v1048
      %v1137 = vpop.f32.mrf.mxu0
      %v1138 = vadd.f32 0.0, %v1137
      %v1139 = vpop.f32.mrf.mxu0
      %1140 = vmatprep.mubr.f32.mxu0 0.0
      %1141 = vmatmul.mubr.f32.gmra.mxu0 %v1051
      %v1142 = vpop.f32.mrf.mxu0
      %v1143 = vadd.f32 0.0, %v1142
      %v1144 = vpop.f32.mrf.mxu0
      %1145 = vmatprep.mubr.f32.mxu0 0.0
      %1146 = vmatmul.mubr.f32.gmra.mxu0 %v1054
      %v1147 = vpop.f32.mrf.mxu0
      %v1148 = vadd.f32 0.0, %v1147
      %v1149 = vpop.f32.mrf.mxu0
      %1150 = vmatprep.mubr.f32.mxu0 0.0
      %1151 = vmatmul.mubr.f32.gmra.mxu0 %v1057
      %v1152 = vpop.f32.mrf.mxu0
      %v1153 = vadd.f32 0.0, %v1152
      %v1154 = vpop.f32.mrf.mxu0
      %1155 = vmatprep.mubr.f32.mxu0 0.0
      %1156 = vmatmul.mubr.f32.gmra.mxu0 %v1060
      %v1157 = vpop.f32.mrf.mxu0
      %v1158 = vadd.f32 0.0, %v1157
      %v1159 = vpop.f32.mrf.mxu0
      %1160 = vmatprep.mubr.f32.mxu0 0.0
      %1161 = vmatmul.mubr.f32.gmra.mxu0 %v1063
      %v1162 = vpop.f32.mrf.mxu0
      %v1163 = vadd.f32 0.0, %v1162
      %v1164 = vpop.f32.mrf.mxu0
      %1165 = vmatprep.mubr.f32.mxu0 0.0
      %1166 = vmatmul.mubr.f32.gmra.mxu0 %v1066
      %v1167 = vpop.f32.mrf.mxu0
      %v1168 = vadd.f32 0.0, %v1167
      %v1169 = vpop.f32.mrf.mxu0
      %1170 = vmatprep.mubr.f32.mxu0 0.0
      %1171 = vmatmul.mubr.f32.gmra.mxu0 %v1069
      %v1172 = vpop.f32.mrf.mxu0
      %v1173 = vadd.f32 0.0, %v1172
      %v1174 = vpop.f32.mrf.mxu0
      %1175 = vdwg.mxu0
      %v1176 = vrcp.pop %v1001
      %v1177 = vrcp.pop %v1004
      %v1178 = vrcp.pop %v1007
      %v1179 = vrcp.pop %v1010
      %v1180 = vrcp.pop %v1013
      %v1181 = vrcp.pop %v1016
      %v1182 = vrcp.pop %v1019
      %v1183 = vrcp.pop %v1022
      %v1184 = vmul.f32 %v1138, %v1176
      %v1185 = vmul.f32 %v1143, %v1177
      %v1186 = vmul.f32 %v1148, %v1178
      %v1187 = vmul.f32 %v1153, %v1179
      %v1188 = vmul.f32 %v1158, %v1180
      %v1189 = vmul.f32 %v1163, %v1181
      %v1190 = vmul.f32 %v1168, %v1182
      %v1191 = vmul.f32 %v1173, %v1183
      %1200 = vrot.lane.b32.xlu0 %v1184, 16
      %v1201 = vpop.permute.xlu0 %1200
      %1202 = vrot.lane.b32.xlu0 %v1185, 16
      %v1203 = vpop.permute.xlu0 %1202
      %1204 = vrot.lane.b32.xlu0 %v1186, 16
      %v1205 = vpop.permute.xlu0 %1204
      %1206 = vrot.lane.b32.xlu0 %v1187, 16
      %v1207 = vpop.permute.xlu0 %1206
      %1208 = vrot.lane.b32.xlu0 %v1188, 16
      %v1209 = vpop.permute.xlu0 %1208
      %1210 = vrot.lane.b32.xlu0 %v1189, 16
      %v1211 = vpop.permute.xlu0 %1210
      %1212 = vrot.lane.b32.xlu0 %v1190, 16
      %v1213 = vpop.permute.xlu0 %1212
      %1214 = vrot.lane.b32.xlu0 %v1191, 16
      %v1215 = vpop.permute.xlu0 %1214
      %v1224 = vsel %vm402, %v774, %v1201
      %v1225 = vsel %vm402, %v775, %v1203
      %v1226 = vsel %vm402, %v776, %v1205
      %v1227 = vsel %vm402, %v777, %v1207
      %v1228 = vsel %vm402, %v778, %v1209
      %v1229 = vsel %vm402, %v779, %v1211
      %v1230 = vsel %vm402, %v780, %v1213
      %v1231 = vsel %vm402, %v781, %v1215
      %v1232 = vld [vmem:[%s2] sm:$0xff]
      %v1233 = vld [vmem:[%s2 + $0x8] sm:$0xff]
      %v1234 = vld [vmem:[%s2 + $0x10] sm:$0xff]
      %v1235 = vld [vmem:[%s2 + $0x18] sm:$0xff]
      %v1236 = vld [vmem:[%s3] sm:$0x1]
      %v1238 = vlaneseq
      %v1239 = vshrl.u32 %v1238, 7
      %v1240 = vsub.s32 0, %v1239
      %v1241 = vrot.slane %v1236, %v1240
      %v1244 = vsel %vm240, %v1224, 0
      %v1247 = vsel %vm240, %v1225, 0
      %v1250 = vsel %vm240, %v1226, 0
      %v1253 = vsel %vm240, %v1227, 0
      %v1256 = vsel %vm240, %v1228, 0
      %v1259 = vsel %vm240, %v1229, 0
      %v1262 = vsel %vm240, %v1230, 0
      %v1265 = vsel %vm240, %v1231, 0
      %1267 = vmatprep.subr.mxu0 0.0
      %1268 = vmatpush1.msra.mxu0 0.0
      %1269 = vmatprep.subr.mxu0 0.0
      %1270 = vmatpush1.msra.mxu0 0.0
      %1271 = vmatprep.subr.mxu0 0.0
      %1272 = vmatpush1.msra.mxu0 0.0
      %1273 = vmatprep.subr.mxu0 0.0
      %1274 = vmatpush1.msra.mxu0 0.0
      %1275 = vmatprep.subr.mxu0 0.0
      %1276 = vmatpush1.msra.mxu0 0.0
      %1277 = vmatprep.subr.mxu0 0.0
      %1278 = vmatpush1.msra.mxu0 0.0
      %1279 = vmatprep.subr.mxu0 0.0
      %1280 = vmatpush1.msra.mxu0 0.0
      %1281 = vmatprep.subr.mxu0 0.0
      %1282 = vmatpush1.msra.mxu0 0.0
      %1283 = vmatprep.subr.mxu0 0.0
      %1284 = vmatpush1.msra.mxu0 0.0
      %1285 = vmatprep.subr.mxu0 0.0
      %1286 = vmatpush1.msra.mxu0 0.0
      %1287 = vmatprep.subr.mxu0 0.0
      %1288 = vmatpush1.msra.mxu0 0.0
      %1289 = vmatprep.subr.mxu0 0.0
      %1290 = vmatpush1.msra.mxu0 0.0
      %1291 = vmatprep.subr.mxu0 0.0
      %1292 = vmatpush1.msra.mxu0 %v1235
      %1293 = vmatprep.subr.mxu0 0.0
      %1294 = vmatpush1.msra.mxu0 %v1234
      %1295 = vmatprep.subr.mxu0 0.0
      %1296 = vmatpush1.msra.mxu0 %v1233
      %1297 = vmatprep.subr.mxu0 0.0
      %1298 = vmatpush1.msra.mxu0 %v1232
      %1299 = vmatprep.subr.mxu0 0.0
      %1300 = vmatpush2.msra.mxu0 0.0
      %1301 = vmatprep.subr.mxu0 0.0
      %1302 = vmatpush2.msra.mxu0 0.0
      %1303 = vmatprep.subr.mxu0 0.0
      %1304 = vmatpush2.msra.mxu0 0.0
      %1305 = vmatprep.subr.mxu0 0.0
      %1306 = vmatpush2.msra.mxu0 0.0
      %1307 = vmatprep.subr.mxu0 0.0
      %1308 = vmatpush2.msra.mxu0 0.0
      %1309 = vmatprep.subr.mxu0 0.0
      %1310 = vmatpush2.msra.mxu0 0.0
      %1311 = vmatprep.subr.mxu0 0.0
      %1312 = vmatpush2.msra.mxu0 0.0
      %1313 = vmatprep.subr.mxu0 0.0
      %1314 = vmatpush2.msra.mxu0 0.0
      %1315 = vmatprep.subr.mxu0 0.0
      %1316 = vmatpush2.msra.mxu0 0.0
      %1317 = vmatprep.subr.mxu0 0.0
      %1318 = vmatpush2.msra.mxu0 0.0
      %1319 = vmatprep.subr.mxu0 0.0
      %1320 = vmatpush2.msra.mxu0 0.0
      %1321 = vmatprep.subr.mxu0 0.0
      %1322 = vmatpush2.msra.mxu0 0.0
      %1323 = vmatprep.subr.mxu0 0.0
      %1324 = vmatpush2.msra.mxu0 0.0
      %1325 = vmatprep.subr.mxu0 0.0
      %1326 = vmatpush2.msra.mxu0 0.0
      %1327 = vmatprep.subr.mxu0 0.0
      %1328 = vmatpush2.msra.mxu0 0.0
      %1329 = vmatprep.subr.mxu0 0.0
      %1330 = vmatpush2.msra.mxu0 0.0
      %1331 = vmatprep.mubr.f32.mxu0 0.0
      %1332 = vmatmul.mubr.f32.gmra.mxu0 %v1244
      %v1333 = vpop.f32.mrf.mxu0
      %v1334 = vadd.f32 %v1241, %v1333
      %v1335 = vpop.f32.mrf.mxu0
      %1336 = vmatprep.mubr.f32.mxu0 0.0
      %1337 = vmatmul.mubr.f32.gmra.mxu0 %v1247
      %v1338 = vpop.f32.mrf.mxu0
      %v1339 = vadd.f32 %v1241, %v1338
      %v1340 = vpop.f32.mrf.mxu0
      %1341 = vmatprep.mubr.f32.mxu0 0.0
      %1342 = vmatmul.mubr.f32.gmra.mxu0 %v1250
      %v1343 = vpop.f32.mrf.mxu0
      %v1344 = vadd.f32 %v1241, %v1343
      %v1345 = vpop.f32.mrf.mxu0
      %1346 = vmatprep.mubr.f32.mxu0 0.0
      %1347 = vmatmul.mubr.f32.gmra.mxu0 %v1253
      %v1348 = vpop.f32.mrf.mxu0
      %v1349 = vadd.f32 %v1241, %v1348
      %v1350 = vpop.f32.mrf.mxu0
      %1351 = vmatprep.mubr.f32.mxu0 0.0
      %1352 = vmatmul.mubr.f32.gmra.mxu0 %v1256
      %v1353 = vpop.f32.mrf.mxu0
      %v1354 = vadd.f32 %v1241, %v1353
      %v1355 = vpop.f32.mrf.mxu0
      %1356 = vmatprep.mubr.f32.mxu0 0.0
      %1357 = vmatmul.mubr.f32.gmra.mxu0 %v1259
      %v1358 = vpop.f32.mrf.mxu0
      %v1359 = vadd.f32 %v1241, %v1358
      %v1360 = vpop.f32.mrf.mxu0
      %1361 = vmatprep.mubr.f32.mxu0 0.0
      %1362 = vmatmul.mubr.f32.gmra.mxu0 %v1262
      %v1363 = vpop.f32.mrf.mxu0
      %v1364 = vadd.f32 %v1241, %v1363
      %v1365 = vpop.f32.mrf.mxu0
      %1366 = vmatprep.mubr.f32.mxu0 0.0
      %1367 = vmatmul.mubr.f32.gmra.mxu0 %v1265
      %v1368 = vpop.f32.mrf.mxu0
      %v1369 = vadd.f32 %v1241, %v1368
      %v1370 = vpop.f32.mrf.mxu0
      %1371 = vdwg.mxu0
      %1372 = vst.msk [vmem:[%s226] sm:$0xff] %vm240, %v1334
      %1373 = vst.msk [vmem:[%s226 + $0x8] sm:$0xff] %vm240, %v1339
      %1374 = vst.msk [vmem:[%s226 + $0x10] sm:$0xff] %vm240, %v1344
      %1375 = vst.msk [vmem:[%s226 + $0x18] sm:$0xff] %vm240, %v1349
      %1376 = vst.msk [vmem:[%s226 + $0x20] sm:$0xff] %vm240, %v1354
      %1377 = vst.msk [vmem:[%s226 + $0x28] sm:$0xff] %vm240, %v1359
      %1378 = vst.msk [vmem:[%s226 + $0x30] sm:$0xff] %vm240, %v1364
      %1379 = vst.msk [vmem:[%s226 + $0x38] sm:$0xff] %vm240, %v1369
      %s1380 = smul.u32 8, %s16
      %p1381 = scmp.lt.s32.totalorder %s1380, 15
      %s1382 = scalar_select %p1381, %s1380, 15
      %s1383 = smul.addr %s1382, 8
      %s1384 = scalar_lea.vmem %s5, %s1383
      // Predicated region
      $region41: #{tpu_custom_call.1} parent=39 // pred_check
        %p1385 = pneg %p144
      $region42: #{tpu_custom_call.1} parent=39 // pred_check_branch
        %1387 = sbr.rel (%p1385) target = $region44
      $region43: #{tpu_custom_call.1} parent=39 // pred_region
        %s1388 = smul.u32 8, %s16
      $region44: #{tpu_custom_call.1} parent=39 // pred_fallthru
        _
    $region40: #{tpu_custom_call.1} parent=5 // pred_fallthru
      _
    %p1389 = scmp.le.s32.totalorder 2, %s11
    // Predicated region
    $region45: #{tpu_custom_call.1} parent=5 // pred_check
      %p1390 = pneg %p1389
    $region46: #{tpu_custom_call.1} parent=5 // pred_check_branch
      %1392 = sbr.rel (%p1390) target = $region48
    $region47: #{tpu_custom_call.1} parent=5 // pred_region
      %s1393 = ssub.s32 %s11, 2
      // Predicated region
      $region49: #{tpu_custom_call.1} parent=47 // pred_check
        %p1394 = pneg %p150
      $region50: #{tpu_custom_call.1} parent=47 // pred_check_branch
        %1396 = sbr.rel (%p1394) target = $region52
      $region51: #{tpu_custom_call.1} parent=47 // pred_region
        %s1397 = smul.u32 8, %s17
        %p1398 = scmp.lt.s32.totalorder %s1397, 15
        %s1399 = scalar_select %p1398, %s1397, 15
        %s1400 = smul.addr %s1399, 8
        %s1401 = scalar_lea.vmem %s5, %s1400
      $region52: #{tpu_custom_call.1} parent=47 // pred_fallthru
        _
    $region48: #{tpu_custom_call.1} parent=5 // pred_fallthru
      _
  $region6: #{tpu_custom_call.1} parent=0 // loop_footer
    %s15 = sadd.s32 1, %s11
  $region7: #{tpu_custom_call.1} parent=0 // loop_footer_branch
    %10 = sbr.rel target = $region3
  $region8: #{tpu_custom_call.1} parent=0 // loop_exit
    _

</llo_original>
